<compile_context>
chip_gen: v5e
topology: v5e:2x2
jax: 0.10.0
libtpu: 0.0.40
codegen_flags: <defaults>
</compile_context>

<pallas_src>
import jax
import jax.numpy as jnp
from jax.experimental import pallas as pl
from jax.experimental.pallas import tpu as pltpu


LANE = 128
SUBLANE = 8


def _round_up(x, m):
    return ((x + m - 1) // m) * m


def _physical_vmem_bytes():
    try:
        return int(pltpu.get_tpu_info().vmem_capacity_bytes)
    except Exception:
        return 64 << 20  # conservative fallback = v7x per-TC VMEM


def _vmem_limit(tile_bytes, resident_bytes):
    # 2x tiles      : double-buffered streaming x / output blocks.
    # 2x residents  : Pallas allocates 2 buffers even for constant-index specs
    #                 (alternative: pipeline_mode=pl.Buffered(1) on those specs).
    need = 2 * tile_bytes + 2 * resident_bytes + (2 << 20)
    upper = max(16 << 20, min(_physical_vmem_bytes() - (8 << 20), 100 << 20))
    return int(min(max(need, 16 << 20), upper))


def _batch_tiling(B, tile_b):
    """Large batch tile for DMA efficiency, but keep >= 2 grid steps when the
    batch allows it so the "parallel" axis can shard across both TensorCores
    on v7x megacore."""
    B_r = _round_up(max(B, SUBLANE), SUBLANE)
    tile_b = max(SUBLANE, min(tile_b, B_r))
    if B_r > SUBLANE and pl.cdiv(B, tile_b) < 2:
        tile_b = max(SUBLANE, _round_up(B_r // 2, SUBLANE))
    return tile_b


# ----------------------------------------------------------------------------
# Kernels
# ----------------------------------------------------------------------------
def _linear_kernel(x_ref, wt_ref, b_ref, o_ref):
    # y = x @ Wt + b ; Wt pre-transposed/padded (F_pad, C_pad), b (1, C_pad) f32.
    # x is streamed in its native dtype and cast in-register to the MXU dtype.
    x = x_ref[...].astype(wt_ref.dtype)
    y = jnp.dot(x, wt_ref[...], preferred_element_type=jnp.float32)
    o_ref[...] = (y + b_ref[...]).astype(o_ref.dtype)


def _mlp_kernel(x_ref, w1t_ref, b1_ref, w2t_ref, b2_ref, o_ref):
    # y = ReLU(x @ W1t + b1) @ W2t + b2
    # Padded hidden columns have zero weight/bias (ReLU(0)=0) and padded K rows
    # of W2t are zero, so the padding is exact.
    # TODO(synk): dropout is eval-mode identity; training parity would need
    #             pltpu.prng_seed + pltpu.prng_random_bits masking.
    x = x_ref[...].astype(w1t_ref.dtype)
    h = jnp.dot(x, w1t_ref[...], preferred_element_type=jnp.float32) + b1_ref[...]
    h = jnp.maximum(h, 0.0)
    y = jnp.dot(h.astype(w2t_ref.dtype), w2t_ref[...],
                preferred_element_type=jnp.float32) + b2_ref[...]
    o_ref[...] = y.astype(o_ref.dtype)


# ----------------------------------------------------------------------------
# Parameter preparation (done ONCE, not per forward call)
# ----------------------------------------------------------------------------
def prepare_linear_params(w, b, compute_dtype=jnp.bfloat16):
    """PyTorch-layout w:(out,in), b:(out,) -> transposed, zero-padded
    (in_pad, out_pad) weight in compute dtype and (1, out_pad) f32 bias."""
    C, F = w.shape
    F_pad = _round_up(F, LANE)
    C_pad = _round_up(C, LANE)
    wt = jnp.zeros((F_pad, C_pad), compute_dtype).at[:F, :C].set(
        w.T.astype(compute_dtype))
    bb = jnp.zeros((1, C_pad), jnp.float32).at[0, :C].set(b.astype(jnp.float32))
    return wt, bb


# ----------------------------------------------------------------------------
# Wrappers (take pre-prepared params)
# ----------------------------------------------------------------------------
def linear_pallas(x, wt, bb, n_out, *, tile_b=512):
    """x:(B,F); wt:(F_pad,C_pad) pre-transposed/padded; bb:(1,C_pad) f32."""
    B, F = x.shape
    F_pad, C_pad = wt.shape
    out_dtype = x.dtype

    Bp = max(B, SUBLANE)
    if Bp != B or F_pad != F:
        # Only for tiny batches / unaligned F.  Padded K columns multiply zero
        # weight rows -> exact.  No-op (no copy) for the common aligned case.
        x = jnp.zeros((Bp, F_pad), x.dtype).at[:B, :F].set(x)

    tile_b = _batch_tiling(Bp, tile_b)
    grid_b = pl.cdiv(Bp, tile_b)

    x_isz = jnp.dtype(x.dtype).itemsize
    w_isz = jnp.dtype(wt.dtype).itemsize
    o_isz = jnp.dtype(out_dtype).itemsize
    tile_bytes = tile_b * F_pad * x_isz + tile_b * C_pad * o_isz
    resident_bytes = F_pad * C_pad * w_isz + C_pad * 4

    out = pl.pallas_call(
        _linear_kernel,
        out_shape=jax.ShapeDtypeStruct((Bp, C_pad), out_dtype),
        grid_spec=pltpu.PrefetchScalarGridSpec(
            num_scalar_prefetch=0,
            grid=(grid_b,),
            in_specs=[
                pl.BlockSpec((tile_b, F_pad), lambda i: (i, 0)),   # streamed x
                pl.BlockSpec((F_pad, C_pad), lambda i: (0, 0)),    # resident W^T
                pl.BlockSpec((1, C_pad), lambda i: (0, 0)),        # resident b
            ],
            out_specs=pl.BlockSpec((tile_b, C_pad), lambda i: (i, 0)),
        ),
        compiler_params=pltpu.CompilerParams(
            dimension_semantics=("parallel",),
            vmem_limit_bytes=_vmem_limit(tile_bytes, resident_bytes),
        ),
    )(x, wt, bb)
    return out[:B, :n_out]


def mlp_pallas(x, w1t, b1p, w2t, b2p, n_out, *, tile_b=512):
    """Projection head: Linear(F->P) + ReLU + (eval) Dropout + Linear(P->C)."""
    B, F = x.shape
    F_pad, P_pad = w1t.shape
    _, C_pad = w2t.shape
    out_dtype = x.dtype

    Bp = max(B, SUBLANE)
    if Bp != B or F_pad != F:
        x = jnp.zeros((Bp, F_pad), x.dtype).at[:B, :F].set(x)

    tile_b = _batch_tiling(Bp, tile_b)
    grid_b = pl.cdiv(Bp, tile_b)

    x_isz = jnp.dtype(x.dtype).itemsize
    w_isz = jnp.dtype(w1t.dtype).itemsize
    o_isz = jnp.dtype(out_dtype).itemsize
    tile_bytes = (tile_b * F_pad * x_isz + tile_b * C_pad * o_isz
                  + tile_b * P_pad * 4)                      # f32 hidden
    resident_bytes = (F_pad * P_pad + P_pad * C_pad) * w_isz + (P_pad + C_pad) * 4

    # TODO(synk): for very large F on v7x (64 MiB VMEM), add a K grid axis
    #             ("arbitrary") with a VMEM f32 accumulator; unnecessary at
    #             these module sizes.
    out = pl.pallas_call(
        _mlp_kernel,
        out_shape=jax.ShapeDtypeStruct((Bp, C_pad), out_dtype),
        grid_spec=pltpu.PrefetchScalarGridSpec(
            num_scalar_prefetch=0,
            grid=(grid_b,),
            in_specs=[
                pl.BlockSpec((tile_b, F_pad), lambda i: (i, 0)),    # streamed x
                pl.BlockSpec((F_pad, P_pad), lambda i: (0, 0)),     # resident W1^T
                pl.BlockSpec((1, P_pad), lambda i: (0, 0)),         # resident b1
                pl.BlockSpec((P_pad, C_pad), lambda i: (0, 0)),     # resident W2^T
                pl.BlockSpec((1, C_pad), lambda i: (0, 0)),         # resident b2
            ],
            out_specs=pl.BlockSpec((tile_b, C_pad), lambda i: (i, 0)),
        ),
        compiler_params=pltpu.CompilerParams(
            dimension_semantics=("parallel",),
            vmem_limit_bytes=_vmem_limit(tile_bytes, resident_bytes),
        ),
    )(x, w1t, b1p, w2t, b2p)
    return out[:B, :n_out]


# ----------------------------------------------------------------------------
# Module equivalent (deterministic PyTorch-style init)
# ----------------------------------------------------------------------------
def init_linear(key, in_features, out_features, dtype=jnp.float32):
    # nn.Linear default: U(-1/sqrt(in), 1/sqrt(in)) for weight and bias.
    kw, kb = jax.random.split(key)
    bound = 1.0 / (in_features ** 0.5)
    w = jax.random.uniform(kw, (out_features, in_features), dtype,
                           minval=-bound, maxval=bound)
    b = jax.random.uniform(kb, (out_features,), dtype,
                           minval=-bound, maxval=bound)
    return w, b


class LogisticRegressionPallas:
    def __init__(self, n_features, n_classes, projection=False, dropout=0.2,
                 key=jax.random.PRNGKey(0), compute_dtype=jnp.bfloat16):
        self.projection = projection
        self.n_classes = n_classes
        cdt = compute_dtype or jnp.bfloat16
        if projection:
            proj_features = n_features // 2
            k1, k2 = jax.random.split(key)
            self.w1, self.b1 = init_linear(k1, n_features, proj_features)
            self.w2, self.b2 = init_linear(k2, proj_features, n_classes)
            # Pre-transposed / padded / cast params, computed ONCE.
            self._w1t, self._b1p = prepare_linear_params(self.w1, self.b1, cdt)
            self._w2t, self._b2p = prepare_linear_params(self.w2, self.b2, cdt)
        else:
            self.w, self.b = init_linear(key, n_features, n_classes)
            self._wt, self._bp = prepare_linear_params(self.w, self.b, cdt)

    def __call__(self, x):
        if self.projection:
            return mlp_pallas(x, self._w1t, self._b1p, self._w2t, self._b2p,
                              self.n_classes)
        return linear_pallas(x, self._wt, self._bp, self.n_classes)


# ----------------------------------------------------------------------------
if __name__ == "__main__":
    key = jax.random.PRNGKey(0)
    kx, kx2, kp = jax.random.split(key, 3)

    batch, n_features, n_classes = 8, 32, 10
    x = jax.random.normal(kx, (batch, n_features), jnp.float32)

    # --- exact f32 path: plain linear head ---
    model_f32 = LogisticRegressionPallas(n_features, n_classes, projection=False,
                                         key=kp, compute_dtype=jnp.float32)
    out = jax.block_until_ready(model_f32(x))
    ref = x @ model_f32.w.T + model_f32.b
    assert out.shape == (batch, n_classes)
    assert jnp.allclose(out, ref, atol=1e-4, rtol=1e-4)

    # --- exact f32 path: projection head (eval-mode dropout = identity) ---
    model_p = LogisticRegressionPallas(n_features, n_classes, projection=True,
                                       key=kp, compute_dtype=jnp.float32)
    out_p = jax.block_until_ready(model_p(x))
    h_ref = jnp.maximum(x @ model_p.w1.T + model_p.b1, 0.0)
    ref_p = h_ref @ model_p.w2.T + model_p.b2
    assert out_p.shape == (batch, n_classes)
    assert jnp.allclose(out_p, ref_p, atol=1e-4, rtol=1e-4)

    # --- default bf16 compute (MXU-native), looser tolerance ---
    model_bf = LogisticRegressionPallas(n_features, n_classes, projection=False,
                                        key=kp)
    out_bf = jax.block_until_ready(model_bf(x))
    assert jnp.allclose(out_bf, x @ model_bf.w.T + model_bf.b,
                        atol=5e-2, rtol=5e-2)

    # --- ragged batch exercises cdiv grid + masked trailing partial block ---
    x_ragged = jax.random.normal(kx2, (12, n_features), jnp.float32)
    out_r = jax.block_until_ready(model_f32(x_ragged))
    ref_r = x_ragged @ model_f32.w.T + model_f32.b
    assert out_r.shape == (12, n_classes)
    assert jnp.allclose(out_r, ref_r, atol=1e-4, rtol=1e-4)

    print("KERNEL_OK")
</pallas_src>

<mosaic_0001>
module attributes {stable_mosaic.version = 11 : i64} {
  func.func @_linear_kernel(%arg0: i32, %arg1: memref<8x128xf32, #tpu.memory_space<vmem>>, %arg2: memref<128x128xf32, #tpu.memory_space<vmem>>, %arg3: memref<1x128xf32, #tpu.memory_space<vmem>>, %arg4: memref<8x128xf32, #tpu.memory_space<vmem>>) attributes {dimension_semantics = [#tpu.dimension_semantics<parallel>], iteration_bounds = array<i64: 1>, scalar_prefetch = 0 : i64, scratch_operands = 0 : i64, tpu.core_type = #tpu.core_type<tc>, window_params = [{transform_indices = @transform_0, window_bounds = array<i64: 8, 128>}, {pipeline_mode = #tpu.pipeline_mode<synchronous>, transform_indices = @transform_1, window_bounds = array<i64: 128, 128>}, {pipeline_mode = #tpu.pipeline_mode<synchronous>, transform_indices = @transform_2, window_bounds = array<i64: 1, 128>}, {transform_indices = @transform_3, window_bounds = array<i64: 8, 128>}]} {
    %c0 = arith.constant 0 : index
    %c0_0 = arith.constant 0 : index
    %0 = vector.load %arg1[%c0, %c0_0] : memref<8x128xf32, #tpu.memory_space<vmem>>, vector<8x128xf32>
    %c0_1 = arith.constant 0 : index
    %c0_2 = arith.constant 0 : index
    %1 = vector.load %arg2[%c0_1, %c0_2] : memref<128x128xf32, #tpu.memory_space<vmem>>, vector<128x128xf32>
    %cst = arith.constant dense<0.000000e+00> : vector<8x128xf32>
    %2 = tpu.matmul %0, %1, %cst {dimension_numbers = #tpu.dot_dimension_numbers<[1], [0], [0], [1], [0, 0, 1, 1], [], []>} : vector<8x128xf32>, vector<128x128xf32>, vector<8x128xf32> -> vector<8x128xf32>
    %c0_3 = arith.constant 0 : index
    %c0_4 = arith.constant 0 : index
    %3 = vector.load %arg3[%c0_3, %c0_4] : memref<1x128xf32, #tpu.memory_space<vmem>>, vector<1x128xf32>
    %4 = vector.broadcast %3 : vector<1x128xf32> to vector<8x128xf32>
    %5 = arith.addf %2, %4 : vector<8x128xf32>
    %c0_5 = arith.constant 0 : index
    %c0_6 = arith.constant 0 : index
    %6 = vector.load %arg4[%c0_5, %c0_6] : memref<8x128xf32, #tpu.memory_space<vmem>>, vector<8x128xf32>
    tpu.vector_store %arg4[%c0_5, %c0_6], %5 {strides = array<i32>} : memref<8x128xf32, #tpu.memory_space<vmem>>, vector<8x128xf32>,
    return
  }
  func.func @transform_0(%arg0: i32) -> (i32, i32) {
    %c0_i32 = arith.constant 0 : i32
    %c0_i32_0 = arith.constant 0 : i32
    return %arg0, %c0_i32 : i32, i32
  }
  func.func @transform_1(%arg0: i32) -> (i32, i32) {
    %c0_i32 = arith.constant 0 : i32
    %c0_i32_0 = arith.constant 0 : i32
    %c0_i32_1 = arith.constant 0 : i32
    return %c0_i32, %c0_i32_0 : i32, i32
  }
  func.func @transform_2(%arg0: i32) -> (i32, i32) {
    %c0_i32 = arith.constant 0 : i32
    %c0_i32_0 = arith.constant 0 : i32
    %c0_i32_1 = arith.constant 0 : i32
    return %c0_i32, %c0_i32_0 : i32, i32
  }
  func.func @transform_3(%arg0: i32) -> (i32, i32) {
    %c0_i32 = arith.constant 0 : i32
    %c0_i32_0 = arith.constant 0 : i32
    return %arg0, %c0_i32 : i32, i32
  }
}

</mosaic_0001>

<llo_original>
// kernel: tpu_custom_call.1
$region0: #{tpu_custom_call.1}
  #allocation0 [shape = 'u32[]', space=smem, size = 0x4, offset = 0x4, fixed_abs, tag = 'smem constant byte address 0x4 - core index']
  #allocation1 [shape = 'u32[72,128]{1,0:T(1,128)}', space=vmem, size = 0x9000, scoped, tag = 'internal scratch']
  %s0 = inlined_call_operand.hbm [shape: f32[8,128], index: 0, kind: input, shape index: {}]
  %s1 = inlined_call_operand.hbm [shape: f32[128,128], index: 1, kind: input, shape index: {}]
  %s2 = inlined_call_operand.vmem [shape: f32[1,128], index: 2, kind: input, shape index: {}]
  %s3 = inlined_call_operand.hbm [shape: f32[8,128], index: 3, kind: output, shape index: {}]
  %s4 = sld [smem:[#allocation0]]
  $region30: #{tpu_custom_call.1} parent=0
    _
  %s6 = ssub.s32 1, %s4
  %s7 = scalar_select 0, %s6, %s4
  $region1: #{tpu_custom_call.1} parent=0
    #allocation2 [shape = 'u8[4096]{0}', space=vmem, size = 0x1000, scoped, tag = 'input window, operand 0, single buffered']
    #allocation3 [shape = 's32[1]{0}', space=sflag, size = 0x4, scoped, tag = 'scoped memory for tpu_custom_call.1']
    #allocation4 [shape = 's32[1]{0}', space=sflag, size = 0x4, scoped, tag = 'scoped memory for tpu_custom_call.1']
    #allocation5 [shape = 'u8[65536]{0}', space=vmem, size = 0x10000, scoped, tag = 'input window, operand 1, single buffered']
    #allocation6 [shape = 's32[1]{0}', space=sflag, size = 0x4, scoped, tag = 'scoped memory for tpu_custom_call.1']
    #allocation7 [shape = 'u8[4096]{0}', space=vmem, size = 0x1000, scoped, tag = 'output window, operand 0, single buffered']
    %8 = vsyncpa [#allocation3], 0
    %9 = vsyncpa [#allocation6], 0
    %10 = vsyncpa [#allocation4], 0
    // Predicated region
    $region2: #{tpu_custom_call.1} parent=1 // pred_check
      _
    $region3: #{tpu_custom_call.1} parent=1 // pred_check_branch
      %12 = sbr.rel (0) target = $region5
    $region4: #{tpu_custom_call.1} parent=1 // pred_region
      %14 = vsyncadd [#allocation3], 0
      %s16 = sshll.u32 %s0, 4
      %s17 = int_to_ptr.hbm [resolvable:$true] %s16
      %s18 = sshll.u32 [#allocation2], 4
      %s19 = int_to_ptr.vmem [resolvable:$true] %s18
      %21 = dma.hbm_to_vmem [thread:$0]  %s17, 128, %s19, [#allocation3]
    $region5: #{tpu_custom_call.1} parent=1 // pred_fallthru
      _
    // Predicated region
    $region6: #{tpu_custom_call.1} parent=1 // pred_check
      _
    $region7: #{tpu_custom_call.1} parent=1 // pred_check_branch
      %23 = sbr.rel (0) target = $region9
    $region8: #{tpu_custom_call.1} parent=1 // pred_region
      %25 = vsyncadd [#allocation6], 0
      %s26 = sshll.u32 %s1, 4
      %s27 = int_to_ptr.hbm [resolvable:$true] %s26
      %s28 = sshll.u32 [#allocation5], 4
      %s29 = int_to_ptr.vmem [resolvable:$true] %s28
      %34 = dma.hbm_to_vmem [thread:$0]  %s27, 2048, %s29, [#allocation6], 128, 128, 8
    $region9: #{tpu_custom_call.1} parent=1 // pred_fallthru
      _
    // Predicated region
    $region10: #{tpu_custom_call.1} parent=1 // pred_check
      _
    $region11: #{tpu_custom_call.1} parent=1 // pred_check_branch
      %36 = sbr.rel (0) target = $region13
    $region12: #{tpu_custom_call.1} parent=1 // pred_region
      _
    $region13: #{tpu_custom_call.1} parent=1 // pred_fallthru
      _
    // Predicated region
    $region14: #{tpu_custom_call.1} parent=1 // pred_check
      _
    $region15: #{tpu_custom_call.1} parent=1 // pred_check_branch
      %38 = sbr.rel (0) target = $region17
    $region16: #{tpu_custom_call.1} parent=1 // pred_region
      %40 = dma.done [#allocation3], 128
    $region17: #{tpu_custom_call.1} parent=1 // pred_fallthru
      _
    // Predicated region
    $region18: #{tpu_custom_call.1} parent=1 // pred_check
      _
    $region19: #{tpu_custom_call.1} parent=1 // pred_check_branch
      %42 = sbr.rel (0) target = $region21
    $region20: #{tpu_custom_call.1} parent=1 // pred_region
      %44 = dma.done [#allocation6], 2048
    $region21: #{tpu_custom_call.1} parent=1 // pred_fallthru
      _
    %v45 = vld [vmem:[#allocation2] sm:$0xff]
    %v46 = vld [vmem:[#allocation5] sm:$0xff]
    %v47 = vld [vmem:[#allocation5 + $0x8] sm:$0xff]
    %v48 = vld [vmem:[#allocation5 + $0x10] sm:$0xff]
    %v49 = vld [vmem:[#allocation5 + $0x18] sm:$0xff]
    %v50 = vld [vmem:[#allocation5 + $0x20] sm:$0xff]
    %v51 = vld [vmem:[#allocation5 + $0x28] sm:$0xff]
    %v52 = vld [vmem:[#allocation5 + $0x30] sm:$0xff]
    %v53 = vld [vmem:[#allocation5 + $0x38] sm:$0xff]
    %v54 = vld [vmem:[#allocation5 + $0x40] sm:$0xff]
    %v55 = vld [vmem:[#allocation5 + $0x48] sm:$0xff]
    %v56 = vld [vmem:[#allocation5 + $0x50] sm:$0xff]
    %v57 = vld [vmem:[#allocation5 + $0x58] sm:$0xff]
    %v58 = vld [vmem:[#allocation5 + $0x60] sm:$0xff]
    %v59 = vld [vmem:[#allocation5 + $0x68] sm:$0xff]
    %v60 = vld [vmem:[#allocation5 + $0x70] sm:$0xff]
    %v61 = vld [vmem:[#allocation5 + $0x78] sm:$0xff]
    %v62 = vld [vmem:[%s2] sm:$0x1]
    %v64 = vperm.slane %v62, 0
    %66 = vmatpush.msra.mxu0 %v61
    %67 = vmatpush.msra.mxu0 %v60
    %68 = vmatpush.msra.mxu0 %v59
    %69 = vmatpush.msra.mxu0 %v58
    %70 = vmatpush.msra.mxu0 %v57
    %71 = vmatpush.msra.mxu0 %v56
    %72 = vmatpush.msra.mxu0 %v55
    %73 = vmatpush.msra.mxu0 %v54
    %74 = vmatpush.msra.mxu0 %v53
    %75 = vmatpush.msra.mxu0 %v52
    %76 = vmatpush.msra.mxu0 %v51
    %77 = vmatpush.msra.mxu0 %v50
    %78 = vmatpush.msra.mxu0 %v49
    %79 = vmatpush.msra.mxu0 %v48
    %80 = vmatpush.msra.mxu0 %v47
    %81 = vmatpush.msra.mxu0 %v46
    %82 = vmatmul.f32.gmra.mxu0 %v45
    %v83 = vpop.f32.mrf.mxu0
    %v84 = vadd.f32 %v64, %v83
    %85 = vdwg.mxu0
    %86 = vst [vmem:[#allocation7] sm:$0xff] %v84
    // Predicated region
    $region22: #{tpu_custom_call.1} parent=1 // pred_check
      _
    $region23: #{tpu_custom_call.1} parent=1 // pred_check_branch
      %88 = sbr.rel (0) target = $region25
    $region24: #{tpu_custom_call.1} parent=1 // pred_region
      %90 = vsyncadd [#allocation4], 0
      %s92 = sshll.u32 [#allocation7], 4
      %s93 = int_to_ptr.vmem [resolvable:$true] %s92
      %s94 = sshll.u32 %s3, 4
      %s95 = int_to_ptr.hbm [resolvable:$true] %s94
      %97 = dma.vmem_to_hbm [thread:$0]  %s93, 128, %s95, [#allocation4]
    $region25: #{tpu_custom_call.1} parent=1 // pred_fallthru
      _
    // Predicated region
    $region26: #{tpu_custom_call.1} parent=1 // pred_check
      _
    $region27: #{tpu_custom_call.1} parent=1 // pred_check_branch
      %99 = sbr.rel (0) target = $region29
    $region28: #{tpu_custom_call.1} parent=1 // pred_region
      %101 = dma.done [#allocation4], 128
    $region29: #{tpu_custom_call.1} parent=1 // pred_fallthru
      _
    %102 = vsyncpa [#allocation3], 1
    %103 = vsyncpa [#allocation6], 1
    %104 = vsyncpa [#allocation4], 1

</llo_original>
